<compile_context>
chip_gen: v6e
topology: v6e:2x2x1
jax: 0.10.0
libtpu: 0.0.40
codegen_flags: <defaults>
</compile_context>

<pallas_src>
import functools

import jax
import jax.numpy as jnp
from jax import lax
from jax.experimental import pallas as pl
from jax.experimental.pallas import tpu as pltpu

LANE = 128                      # TPU lane width (last dim)
SUB = 8                         # base sublane multiple (32-bit)
BLOCK_BYTES = 4 << 20           # ~4 MiB per input buffer (double-buffered)
SMALL_PAD_LIMIT = 1 << 15       # below this element count, padding is cheap
VMEM_LIMIT_BYTES = 32 * 1024 * 1024


def _round_up(x, m):
    return ((x + m - 1) // m) * m


def _tensorcores_per_device():
    """Best-effort TensorCore count behind one JAX device (megacore split)."""
    try:
        kind = str(jax.devices()[0].device_kind).lower()
    except Exception:
        return 1
    # v4 (megacore) and v7x expose two TensorCores per device; v5e/v6e one.
    return 2 if ("v7" in kind or "v4" in kind) else 1


def _sq_err_partial_kernel(x_ref, o_ref, *, target, rows, blocks_per_split,
                           total_blocks, exact):
    """Accumulate a vreg-shaped partial sum of (x - target)^2.

    Grid = (n_split, blocks_per_split); the first axis is 'parallel' so it can
    be sharded across TensorCores.  Each split owns its own (acc_rows, 128)
    output block, which stays resident in VMEM across the inner axis.
    """
    c = pl.program_id(0)
    i = pl.program_id(1)

    @pl.when(i == 0)
    def _():
        o_ref[...] = jnp.zeros_like(o_ref)

    br = x_ref.shape[0]          # static block-row count (packed-tile multiple)
    acc_rows = o_ref.shape[0]    # static resident-accumulator rows
    blk = c * blocks_per_split + i       # intended (unclamped) block id
    row0 = blk * br                      # first global row covered

    def accumulate(mask_rows):
        x = x_ref[...].astype(jnp.float32)
        d = x - jnp.float32(target) if target != 0.0 else x
        if mask_rows:
            # Ragged tail block: Pallas pads OOB block reads with garbage.
            row_ids = row0 + lax.broadcasted_iota(jnp.int32, (br, LANE), 0)
            d = jnp.where(row_ids < rows, d, 0.0)
        sq = d * d
        # Fold (br,128) into the resident (acc_rows,128) accumulator with pure
        # VPU adds (no per-step cross-lane reduce, no masked scalar stores).
        o_ref[...] += sq.reshape(br // acc_rows, acc_rows, LANE).sum(axis=0)

    if exact:
        # Grid tiles the slab exactly: no masks, no branches in the hot loop.
        accumulate(mask_rows=False)
    else:
        full = row0 + br <= rows         # fully in-bounds block -> fast path
        dup = blk >= total_blocks        # duplicated clamped block -> skip

        @pl.when(full)
        def _():
            accumulate(mask_rows=False)

        @pl.when(jnp.logical_and(jnp.logical_not(full), jnp.logical_not(dup)))
        def _():
            accumulate(mask_rows=True)


def ls_loss(output_d, mode="g", isreal=True):
    """Pallas implementation of LSLoss.forward: mean((x - t)^2), t in {0,1}."""
    assert mode in ("g", "d")
    target = 1.0 if (mode == "g" or isreal) else 0.0

    n = output_d.size
    flat = output_d.reshape(-1)                  # native dtype; cast in-kernel
    itemsize = flat.dtype.itemsize
    sub_mult = SUB * max(1, 4 // itemsize)       # f32: 8, bf16: 16, int8: 32
    min_elems = sub_mult * LANE

    tail_vals = None
    if n % LANE == 0 and n >= min_elems:
        # Lane-aligned and big enough: stream directly, zero extra HBM copies.
        rows = n // LANE
        x2d = flat.reshape(rows, LANE)
    elif n < max(min_elems, SMALL_PAD_LIMIT):
        # Tiny input: cheap pad (pad value == target contributes exactly 0),
        # rounded to a packed-tile multiple so it is one full unmasked block.
        rows = _round_up(max(pl.cdiv(n, LANE), sub_mult), sub_mult)
        total = rows * LANE
        x2d = jnp.pad(flat, (0, total - n),
                      constant_values=target).reshape(rows, LANE)
    else:
        # Large ragged size: avoid a full-tensor pad copy.  Kernel streams the
        # lane-aligned prefix; the (<128-element) tail is reduced in plain JAX.
        n_main = (n // LANE) * LANE
        rows = n_main // LANE
        x2d = flat[:n_main].reshape(rows, LANE)
        tail_vals = flat[n_main:]

    # Byte-targeted row tiles (packed-sublane multiple) to amortize the
    # per-grid-step overhead on this HBM-bandwidth-bound reduction.
    block_rows_max = max(sub_mult,
                         (BLOCK_BYTES // (LANE * itemsize)) // sub_mult * sub_mult)
    br = min(block_rows_max, (rows // sub_mult) * sub_mult)
    total_blocks = pl.cdiv(rows, br)

    # Leading 'parallel' axis: shards the independent row range across
    # TensorCores only on chips that actually have two per device.
    n_split = min(_tensorcores_per_device(), total_blocks)
    n_split = max(n_split, 1)
    bps = pl.cdiv(total_blocks, n_split)

    # Statically known "grid tiles the slab exactly" -> mask/branch-free kernel.
    exact = (rows % br == 0) and (n_split * bps == total_blocks)

    # Wide resident accumulator: independent VALU add chains in the fold.
    acc_rows = SUB
    for cand in (64, 32, 16):
        if br % cand == 0:
            acc_rows = cand
            break

    kernel = functools.partial(
        _sq_err_partial_kernel,
        target=target, rows=rows, blocks_per_split=bps,
        total_blocks=total_blocks, exact=exact)

    if n_split == 1:
        in_index_map = lambda c, i: (i, 0)            # clamp-free on 1-TC chips
    else:
        # Clamp so the DMA'd block always starts in-bounds; the in-kernel
        # dup-block check (unclamped id) skips any duplicated block.
        in_index_map = lambda c, i: (jnp.minimum(c * bps + i,
                                                 total_blocks - 1), 0)

    partials = pl.pallas_call(
        kernel,
        out_shape=jax.ShapeDtypeStruct((n_split * acc_rows, LANE), jnp.float32),
        grid_spec=pltpu.PrefetchScalarGridSpec(
            num_scalar_prefetch=0,
            grid=(n_split, bps),
            in_specs=[pl.BlockSpec((br, LANE), in_index_map)],
            out_specs=pl.BlockSpec((acc_rows, LANE), lambda c, i: (c, 0)),
        ),
        compiler_params=pltpu.CompilerParams(
            dimension_semantics=("parallel", "arbitrary"),
            vmem_limit_bytes=VMEM_LIMIT_BYTES,
        ),
    )(x2d)

    # Tiny final reduction (at most 2*64*128 f32) + optional <128-element tail.
    total_sum = jnp.sum(partials)
    if tail_vals is not None:
        t = tail_vals.astype(jnp.float32) - jnp.float32(target)
        total_sum = total_sum + jnp.sum(t * t)
    return total_sum / jnp.float32(n)


if __name__ == "__main__":
    key = jax.random.PRNGKey(0)
    k1, k2, k3, k4, k5 = jax.random.split(key, 5)

    cases = [
        # primary shape consistent with a small PGGAN discriminator output
        (jax.random.normal(k1, (2, 4, 16, 16), dtype=jnp.float32), "nchw_f32"),
        # tiny ragged element count -> pad fast path
        (jax.random.normal(k2, (2, 3, 7, 5), dtype=jnp.float32), "ragged_f32"),
        # bf16 input -> 16-row packed-sublane tiling
        (jax.random.normal(k3, (2, 8, 96, 96), dtype=jnp.bfloat16), "bf16"),
        # multiple blocks / possible core split path
        (jax.random.normal(k4, (2, 4, 192, 192), dtype=jnp.float32), "big_f32"),
        # large ragged -> aligned-prefix kernel + JAX tail, masked last block
        (jax.random.normal(k5, (3, 5, 77, 41), dtype=jnp.float32), "prefix_f32"),
    ]

    ok = True
    for x, name in cases:
        for mode, isreal in [("g", True), ("d", True), ("d", False)]:
            got = jax.block_until_ready(ls_loss(x, mode=mode, isreal=isreal))
            tgt = 1.0 if (mode == "g" or isreal) else 0.0
            want = jnp.mean((x.astype(jnp.float32) - tgt) ** 2)
            if not jnp.allclose(got, want, rtol=1e-4, atol=1e-5):
                ok = False
                print(f"MISMATCH {name} mode={mode} isreal={isreal}: "
                      f"{got} vs {want}")

    if ok:
        print("KERNEL_OK")
</pallas_src>

<mosaic_0001>
module attributes {stable_mosaic.version = 11 : i64} {
  func.func @_sq_err_partial_kernel(%arg0: i32, %arg1: i32, %arg2: memref<16x128xf32, #tpu.memory_space<vmem>>, %arg3: memref<16x128xf32, #tpu.memory_space<vmem>>) attributes {dimension_semantics = [#tpu.dimension_semantics<parallel>, #tpu.dimension_semantics<arbitrary>], iteration_bounds = array<i64: 1, 1>, scalar_prefetch = 0 : i64, scratch_operands = 0 : i64, tpu.core_type = #tpu.core_type<tc>, window_params = [{transform_indices = @transform_0, window_bounds = array<i64: 16, 128>}, {transform_indices = @transform_1, window_bounds = array<i64: 16, 128>}]} {
    %c0_i32 = arith.constant 0 : i32
    %0 = arith.cmpi eq, %arg1, %c0_i32 : i32
    %1 = arith.extui %0 : i1 to i32
    %c0_i32_0 = arith.constant 0 : i32
    %2 = arith.cmpi ne, %1, %c0_i32_0 : i32
    scf.if %2 {
      %cst_7 = arith.constant 0.000000e+00 : f32
      %12 = vector.broadcast %cst_7 : f32 to vector<16x128xf32>
      %c0_8 = arith.constant 0 : index
      %c0_9 = arith.constant 0 : index
      %13 = vector.load %arg3[%c0_8, %c0_9] : memref<16x128xf32, #tpu.memory_space<vmem>>, vector<16x128xf32>
      tpu.vector_store %arg3[%c0_8, %c0_9], %12 {strides = array<i32>} : memref<16x128xf32, #tpu.memory_space<vmem>>, vector<16x128xf32>,
    } else {
    }
    %c0 = arith.constant 0 : index
    %c0_1 = arith.constant 0 : index
    %3 = vector.load %arg2[%c0, %c0_1] : memref<16x128xf32, #tpu.memory_space<vmem>>, vector<16x128xf32>
    %cst = arith.constant 1.000000e+00 : f32
    %4 = vector.broadcast %cst : f32 to vector<16x128xf32>
    %5 = arith.subf %3, %4 : vector<16x128xf32>
    %6 = arith.mulf %5, %5 : vector<16x128xf32>
    %c0_2 = arith.constant 0 : index
    %c0_3 = arith.constant 0 : index
    %7 = vector.load %arg3[%c0_2, %c0_3] : memref<16x128xf32, #tpu.memory_space<vmem>>, vector<16x128xf32>
    %8 = vector.shape_cast %6 : vector<16x128xf32> to vector<1x16x128xf32>
    %cst_4 = arith.constant dense<0.000000e+00> : vector<16x128xf32>
    %9 = vector.multi_reduction <add>, %8, %cst_4 [0] : vector<1x16x128xf32> to vector<16x128xf32>
    %10 = arith.addf %7, %9 : vector<16x128xf32>
    %c0_5 = arith.constant 0 : index
    %c0_6 = arith.constant 0 : index
    %11 = vector.load %arg3[%c0_5, %c0_6] : memref<16x128xf32, #tpu.memory_space<vmem>>, vector<16x128xf32>
    tpu.vector_store %arg3[%c0_5, %c0_6], %10 {strides = array<i32>} : memref<16x128xf32, #tpu.memory_space<vmem>>, vector<16x128xf32>,
    return
  }
  func.func @transform_0(%arg0: i32, %arg1: i32) -> (i32, i32) {
    %c0_i32 = arith.constant 0 : i32
    %c0_i32_0 = arith.constant 0 : i32
    return %arg1, %c0_i32 : i32, i32
  }
  func.func @transform_1(%arg0: i32, %arg1: i32) -> (i32, i32) {
    %c0_i32 = arith.constant 0 : i32
    %c0_i32_0 = arith.constant 0 : i32
    return %arg0, %c0_i32 : i32, i32
  }
}

</mosaic_0001>

<llo_original>
// kernel: tpu_custom_call.1
$region0: #{tpu_custom_call.1}
  #allocation0 [shape = 'u32[]', space=smem, size = 0x4, offset = 0x4, fixed_abs, tag = 'smem constant byte address 0x4 - core index']
  #allocation1 [shape = 'u32[144,128]{1,0:T(1,128)}', space=vmem, size = 0x12000, scoped, tag = 'internal scratch']
  %s0 = inlined_call_operand.hbm [shape: f32[16,128], index: 0, kind: input, shape index: {}]
  %s1 = inlined_call_operand.hbm [shape: f32[16,128], index: 1, kind: output, shape index: {}]
  %s2 = sld [smem:[#allocation0]]
  $region22: #{tpu_custom_call.1} parent=0
    _
  %s4 = ssub.s32 1, %s2
  %s5 = scalar_select 0, %s4, %s2
  $region1: #{tpu_custom_call.1} parent=0
    #allocation2 [shape = 'u8[8192]{0}', space=vmem, size = 0x2000, scoped, tag = 'input window, operand 0, single buffered']
    #allocation3 [shape = 's32[1]{0}', space=sflag, size = 0x4, scoped, tag = 'scoped memory for tpu_custom_call.1']
    #allocation4 [shape = 's32[1]{0}', space=sflag, size = 0x4, scoped, tag = 'scoped memory for tpu_custom_call.1']
    #allocation5 [shape = 'u8[8192]{0}', space=vmem, size = 0x2000, scoped, tag = 'output window, operand 0, single buffered']
    %6 = vsyncpa [#allocation3], 0
    %7 = vsyncpa [#allocation4], 0
    // Predicated region
    $region2: #{tpu_custom_call.1} parent=1 // pred_check
      _
    $region3: #{tpu_custom_call.1} parent=1 // pred_check_branch
      %9 = sbr.rel (0) target = $region5
    $region4: #{tpu_custom_call.1} parent=1 // pred_region
      %s11 = ssub.s32 256, 256
      %12 = vsyncadd [#allocation3], %s11
      %s13 = sshll.u32 [#allocation2], 4
      %s14 = int_to_ptr.vmem [resolvable:$true] %s13
      %19 = dma.hbm_to_vmem [thread:$0]  %s0, 256, %s14, [#allocation3], 128, 128, 8
    $region5: #{tpu_custom_call.1} parent=1 // pred_fallthru
      _
    // Predicated region
    $region6: #{tpu_custom_call.1} parent=1 // pred_check
      _
    $region7: #{tpu_custom_call.1} parent=1 // pred_check_branch
      %21 = sbr.rel (0) target = $region9
    $region8: #{tpu_custom_call.1} parent=1 // pred_region
      %22 = dma.done [#allocation3], 256
    $region9: #{tpu_custom_call.1} parent=1 // pred_fallthru
      _
    %p23 = scmp.eq.s32.totalorder 0, 0
    // Predicated region
    $region10: #{tpu_custom_call.1} parent=1 // pred_check
      %p24 = pneg %p23
    $region11: #{tpu_custom_call.1} parent=1 // pred_check_branch
      %26 = sbr.rel (%p24) target = $region13
    $region12: #{tpu_custom_call.1} parent=1 // pred_region
      %27 = vst [vmem:[#allocation5] sm:$0xff] 0.0
      %28 = vst [vmem:[#allocation5 + $0x8] sm:$0xff] 0.0
    $region13: #{tpu_custom_call.1} parent=1 // pred_fallthru
      _
    %v29 = vld [vmem:[#allocation2] sm:$0xff]
    %v30 = vld [vmem:[#allocation2 + $0x8] sm:$0xff]
    %v31 = vsub.f32 %v29, 1.0
    %v32 = vsub.f32 %v30, 1.0
    %v33 = vmul.f32 %v31, %v31
    %v34 = vmul.f32 %v32, %v32
    %v35 = vld [vmem:[#allocation5] sm:$0xff]
    %v36 = vld [vmem:[#allocation5 + $0x8] sm:$0xff]
    %v37 = vadd.f32 %v33, 0.0
    %v38 = vadd.f32 %v34, 0.0
    %v39 = vadd.f32 %v35, %v37
    %v40 = vadd.f32 %v36, %v38
    %41 = vst [vmem:[#allocation5] sm:$0xff] %v39
    %42 = vst [vmem:[#allocation5 + $0x8] sm:$0xff] %v40
    // Predicated region
    $region14: #{tpu_custom_call.1} parent=1 // pred_check
      _
    $region15: #{tpu_custom_call.1} parent=1 // pred_check_branch
      %44 = sbr.rel (0) target = $region17
    $region16: #{tpu_custom_call.1} parent=1 // pred_region
      %s46 = ssub.s32 256, 256
      %47 = vsyncadd [#allocation4], %s46
      %s48 = sshll.u32 [#allocation5], 4
      %s49 = int_to_ptr.vmem [resolvable:$true] %s48
      %54 = dma.vmem_to_hbm [thread:$0]  %s49, 256, %s1, [#allocation4], 128, 128, 8
    $region17: #{tpu_custom_call.1} parent=1 // pred_fallthru
      _
    // Predicated region
    $region18: #{tpu_custom_call.1} parent=1 // pred_check
      _
    $region19: #{tpu_custom_call.1} parent=1 // pred_check_branch
      %56 = sbr.rel (0) target = $region21
    $region20: #{tpu_custom_call.1} parent=1 // pred_region
      %57 = dma.done [#allocation4], 256
    $region21: #{tpu_custom_call.1} parent=1 // pred_fallthru
      _
    %58 = vsyncpa [#allocation3], 1
    %59 = vsyncpa [#allocation4], 1

</llo_original>
